<compile_context>
chip_gen: v7x
topology: tpu7x:2x2x1
jax: 0.10.0
libtpu: 0.0.40
codegen_flags: <defaults>
</compile_context>

<pallas_src>
import jax
import jax.numpy as jnp
from jax.experimental import pallas as pl
from jax.experimental.pallas import tpu as pltpu


def _round_up(n, m):
    return ((n + m - 1) // m) * m


def _decoder_kernel(x_ref,
                    w1_ref, sh1_ref,
                    w2_ref, sh2_ref,
                    w3_ref, sh3_ref,
                    out_ref):
    def layer(h, w_ref, sh_ref):
        # Linear with BN-scale folded into W (MXU, f32 accumulate),
        # + folded BN shift, + LeakyReLU(0.01), all in f32.
        y = jnp.dot(h, w_ref[...], preferred_element_type=jnp.float32)
        y = y + sh_ref[...]
        return jnp.where(y > 0, y, 0.01 * y)

    h = layer(x_ref[...], w1_ref, sh1_ref)                       # (TB, 128) f32
    h = layer(h.astype(jnp.bfloat16), w2_ref, sh2_ref)           # (TB, 256) f32
    h = layer(h.astype(jnp.bfloat16), w3_ref, sh3_ref)           # (TB, 896) f32
    out_ref[...] = h.astype(out_ref.dtype)                       # bf16 store (lane-dense)


def decoder_forward(x, params, output_size=28 * 28, tb=1024):
    """x: (B, latent_dim) float32. params: padded bf16 folded weights + f32 shifts.

    Returns a (B, output_size) bf16 array (upcast in the caller if f32 is required).
    """
    B, D_in = x.shape
    d0p, d1p = params["w1"].shape
    d2p = params["w2"].shape[1]
    d3p = params["w3"].shape[1]

    # Batch tiling: multiples of 16 (native bf16 sublane packing). If the batch
    # needs more than one 16-row tile, guarantee >= 2 tiles so the "parallel"
    # axis shards across both TensorCores on v7x; cap the tile at `tb` (1024) to
    # amortize the ~0.35us per-grid-step overhead without over-padding small B.
    B16 = _round_up(max(B, 16), 16)
    if B16 <= 16:
        TB = 16
    else:
        TB = min(tb, _round_up((B16 + 1) // 2, 16))
    Bp = _round_up(B16, TB)
    n_tiles = Bp // TB

    # Cast to bf16 *before* padding: one cheap pad op in the prologue, no extra
    # f32 materializations ahead of the pallas_call.
    xp = jnp.pad(x.astype(jnp.bfloat16), ((0, Bp - B), (0, d0p - D_in)))

    w1, sh1 = params["w1"], params["sh1"]
    w2, sh2 = params["w2"], params["sh2"]
    w3, sh3 = params["w3"], params["sh3"]

    flops = 2 * Bp * (d0p * d1p + d1p * d2p + d2p * d3p)
    bytes_accessed = (xp.size * 2
                      + (w1.size + w2.size + w3.size) * 2
                      + (sh1.size + sh2.size + sh3.size) * 4
                      + Bp * d3p * 2)                            # bf16 output
    cost = pl.CostEstimate(flops=flops, transcendentals=0,
                           bytes_accessed=bytes_accessed)

    # Weights/shifts: constant block index -> VMEM-resident across batch tiles,
    # and single-buffered (double buffer would be pure VMEM waste).
    const_spec = lambda arr: pl.BlockSpec(arr.shape, lambda i: (0, 0),
                                          pipeline_mode=pl.Buffered(1))

    out_p = pl.pallas_call(
        _decoder_kernel,
        out_shape=jax.ShapeDtypeStruct((Bp, d3p), jnp.bfloat16),
        grid=(n_tiles,),
        in_specs=[
            pl.BlockSpec((TB, d0p), lambda i: (i, 0)),   # activations: tiled over batch
            const_spec(w1), const_spec(sh1),
            const_spec(w2), const_spec(sh2),
            const_spec(w3), const_spec(sh3),
        ],
        out_specs=pl.BlockSpec((TB, d3p), lambda i: (i, 0)),
        compiler_params=pltpu.CompilerParams(
            dimension_semantics=("parallel",),
            vmem_limit_bytes=32 * 1024 * 1024),
        cost_estimate=cost,
    )(xp, w1, sh1, w2, sh2, w3, sh3)

    return out_p[:B, :output_size]


def init_decoder_params(key, latent_dim=20, output_size=28 * 28, eps=1e-5):
    """Synthetic init matching nn.Linear / nn.BatchNorm1d defaults.

    Returns (kernel_params, ref_params):
      kernel_params: lane-padded, BN-folded bf16 weights + f32 shifts for the kernel.
      ref_params:    unpadded f32 weights / scales / shifts for a semantic reference.
    """
    dims = [latent_dim, 100, 200, output_size]
    pdims = [_round_up(d, 128) for d in dims]
    kernel_params, ref_params = {}, {}
    for i in range(3):
        fan_in, fan_out = dims[i], dims[i + 1]
        pin, pout = pdims[i], pdims[i + 1]
        key, kw, kb = jax.random.split(key, 3)
        bound = 1.0 / (fan_in ** 0.5)
        # PyTorch stores Linear weight as (out, in); we keep (in, out) for h @ W.
        w = jax.random.uniform(kw, (fan_in, fan_out), jnp.float32, -bound, bound)
        b = jax.random.uniform(kb, (fan_out,), jnp.float32, -bound, bound)
        # BatchNorm1d(fan_out) at init: gamma=1, beta=0, running_mean=0, running_var=1.
        gamma = jnp.ones((fan_out,), jnp.float32)
        beta = jnp.zeros((fan_out,), jnp.float32)
        running_mean = jnp.zeros((fan_out,), jnp.float32)
        running_var = jnp.ones((fan_out,), jnp.float32)
        # Fold: BN(Wx + b) = x @ (W*scale) + (scale*(b - mean) + beta)
        scale = gamma / jnp.sqrt(running_var + eps)
        shift = scale * (b - running_mean) + beta
        w_folded = w * scale[None, :]
        # Zero-pad to lane-aligned shapes (zeros preserved by shift=0 + LeakyReLU).
        wp = (jnp.zeros((pin, pout), jnp.float32)
              .at[:fan_in, :fan_out].set(w_folded)).astype(jnp.bfloat16)
        shp = jnp.zeros((1, pout), jnp.float32).at[0, :fan_out].set(shift)
        kernel_params[f"w{i + 1}"] = wp
        kernel_params[f"sh{i + 1}"] = shp
        ref_params[f"w{i + 1}"] = w
        ref_params[f"scale{i + 1}"] = scale
        ref_params[f"shift{i + 1}"] = shift
    return kernel_params, ref_params


def decoder_reference_mirror(x, params, output_size=28 * 28):
    """Plain-JAX reference mirroring the kernel math (padded bf16 weights, f32 accum, bf16 out)."""
    B, D_in = x.shape
    d0p = params["w1"].shape[0]
    h = jnp.pad(x.astype(jnp.bfloat16), ((0, 0), (0, d0p - D_in)))
    for i in (1, 2, 3):
        y = jnp.dot(h, params[f"w{i}"], preferred_element_type=jnp.float32)
        y = y + params[f"sh{i}"]
        h = jnp.where(y > 0, y, 0.01 * y)
        if i < 3:
            h = h.astype(jnp.bfloat16)
    return h[:, :output_size].astype(jnp.bfloat16)


def decoder_reference_f32(x, ref_params):
    """Full-precision semantic reference (unpadded, unfolded)."""
    h = x
    for i in (1, 2, 3):
        y = (h @ ref_params[f"w{i}"]) * ref_params[f"scale{i}"] + ref_params[f"shift{i}"]
        h = jnp.where(y > 0, y, 0.01 * y)
    return h


if __name__ == "__main__":
    key = jax.random.PRNGKey(0)
    k_params, k_x = jax.random.split(key)

    latent_dim = 20
    output_size = 28 * 28
    batch = 8

    kernel_params, ref_params = init_decoder_params(k_params, latent_dim, output_size)
    x = jax.random.normal(k_x, (batch, latent_dim), jnp.float32)

    out = decoder_forward(x, kernel_params, output_size)
    out = jax.block_until_ready(out)
    assert out.shape == (batch, output_size)
    assert out.dtype == jnp.bfloat16
    out_f32 = out.astype(jnp.float32)

    # Exact-path check (same padded bf16-weight / f32-accumulate / bf16-store math).
    ref_mirror = decoder_reference_mirror(x, kernel_params, output_size).astype(jnp.float32)
    assert jnp.allclose(out_f32, ref_mirror, atol=2e-2, rtol=2e-2)

    # Semantic check vs. full f32 math (bf16 weights + bf16 output -> looser tolerance).
    ref_f32 = decoder_reference_f32(x, ref_params)
    assert jnp.allclose(out_f32, ref_f32, atol=8e-2, rtol=8e-2)

    print("KERNEL_OK")
</pallas_src>

<mosaic_0001>
module attributes {stable_mosaic.version = 11 : i64} {
  func.func @_decoder_kernel(%arg0: i32, %arg1: memref<16x128xbf16, #tpu.memory_space<vmem>>, %arg2: memref<128x128xbf16, #tpu.memory_space<vmem>>, %arg3: memref<1x128xf32, #tpu.memory_space<vmem>>, %arg4: memref<128x256xbf16, #tpu.memory_space<vmem>>, %arg5: memref<1x256xf32, #tpu.memory_space<vmem>>, %arg6: memref<256x896xbf16, #tpu.memory_space<vmem>>, %arg7: memref<1x896xf32, #tpu.memory_space<vmem>>, %arg8: memref<16x896xbf16, #tpu.memory_space<vmem>>) attributes {dimension_semantics = [#tpu.dimension_semantics<parallel>], iteration_bounds = array<i64: 1>, scalar_prefetch = 0 : i64, scratch_operands = 0 : i64, tpu.core_type = #tpu.core_type<tc>, window_params = [{transform_indices = @transform_0, window_bounds = array<i64: 16, 128>}, {pipeline_mode = #tpu.pipeline_mode<synchronous>, transform_indices = @transform_1, window_bounds = array<i64: 128, 128>}, {pipeline_mode = #tpu.pipeline_mode<synchronous>, transform_indices = @transform_2, window_bounds = array<i64: 1, 128>}, {pipeline_mode = #tpu.pipeline_mode<synchronous>, transform_indices = @transform_3, window_bounds = array<i64: 128, 256>}, {pipeline_mode = #tpu.pipeline_mode<synchronous>, transform_indices = @transform_4, window_bounds = array<i64: 1, 256>}, {pipeline_mode = #tpu.pipeline_mode<synchronous>, transform_indices = @transform_5, window_bounds = array<i64: 256, 896>}, {pipeline_mode = #tpu.pipeline_mode<synchronous>, transform_indices = @transform_6, window_bounds = array<i64: 1, 896>}, {transform_indices = @transform_7, window_bounds = array<i64: 16, 896>}]} {
    %c0 = arith.constant 0 : index
    %c0_0 = arith.constant 0 : index
    %0 = vector.load %arg1[%c0, %c0_0] : memref<16x128xbf16, #tpu.memory_space<vmem>>, vector<16x128xbf16>
    %c0_1 = arith.constant 0 : index
    %c0_2 = arith.constant 0 : index
    %1 = vector.load %arg2[%c0_1, %c0_2] : memref<128x128xbf16, #tpu.memory_space<vmem>>, vector<128x128xbf16>
    %cst = arith.constant dense<0.000000e+00> : vector<16x128xf32>
    %2 = tpu.matmul %0, %1, %cst {dimension_numbers = #tpu.dot_dimension_numbers<[1], [0], [0], [1], [0, 0, 1, 1], [], []>} : vector<16x128xbf16>, vector<128x128xbf16>, vector<16x128xf32> -> vector<16x128xf32>
    %c0_3 = arith.constant 0 : index
    %c0_4 = arith.constant 0 : index
    %3 = vector.load %arg3[%c0_3, %c0_4] : memref<1x128xf32, #tpu.memory_space<vmem>>, vector<1x128xf32>
    %4 = vector.broadcast %3 : vector<1x128xf32> to vector<16x128xf32>
    %5 = arith.addf %2, %4 : vector<16x128xf32>
    %cst_5 = arith.constant 0.000000e+00 : f32
    %6 = vector.broadcast %cst_5 : f32 to vector<16x128xf32>
    %7 = arith.cmpf ogt, %5, %6 : vector<16x128xf32>
    %cst_6 = arith.constant 0.00999999977 : f32
    %8 = vector.broadcast %cst_6 : f32 to vector<16x128xf32>
    %9 = arith.mulf %8, %5 : vector<16x128xf32>
    %10 = arith.select %7, %5, %9 : vector<16x128xi1>, vector<16x128xf32>
    %11 = arith.truncf %10 : vector<16x128xf32> to vector<16x128xbf16>
    %c0_7 = arith.constant 0 : index
    %c0_8 = arith.constant 0 : index
    %12 = vector.load %arg4[%c0_7, %c0_8] : memref<128x256xbf16, #tpu.memory_space<vmem>>, vector<128x256xbf16>
    %cst_9 = arith.constant dense<0.000000e+00> : vector<16x256xf32>
    %13 = tpu.matmul %11, %12, %cst_9 {dimension_numbers = #tpu.dot_dimension_numbers<[1], [0], [0], [1], [0, 0, 1, 1], [], []>} : vector<16x128xbf16>, vector<128x256xbf16>, vector<16x256xf32> -> vector<16x256xf32>
    %c0_10 = arith.constant 0 : index
    %c0_11 = arith.constant 0 : index
    %14 = vector.load %arg5[%c0_10, %c0_11] : memref<1x256xf32, #tpu.memory_space<vmem>>, vector<1x256xf32>
    %15 = vector.broadcast %14 : vector<1x256xf32> to vector<16x256xf32>
    %16 = arith.addf %13, %15 : vector<16x256xf32>
    %cst_12 = arith.constant 0.000000e+00 : f32
    %17 = vector.broadcast %cst_12 : f32 to vector<16x256xf32>
    %18 = arith.cmpf ogt, %16, %17 : vector<16x256xf32>
    %cst_13 = arith.constant 0.00999999977 : f32
    %19 = vector.broadcast %cst_13 : f32 to vector<16x256xf32>
    %20 = arith.mulf %19, %16 : vector<16x256xf32>
    %21 = arith.select %18, %16, %20 : vector<16x256xi1>, vector<16x256xf32>
    %22 = arith.truncf %21 : vector<16x256xf32> to vector<16x256xbf16>
    %c0_14 = arith.constant 0 : index
    %c0_15 = arith.constant 0 : index
    %23 = vector.load %arg6[%c0_14, %c0_15] : memref<256x896xbf16, #tpu.memory_space<vmem>>, vector<256x896xbf16>
    %cst_16 = arith.constant dense<0.000000e+00> : vector<16x896xf32>
    %24 = tpu.matmul %22, %23, %cst_16 {dimension_numbers = #tpu.dot_dimension_numbers<[1], [0], [0], [1], [0, 0, 1, 1], [], []>} : vector<16x256xbf16>, vector<256x896xbf16>, vector<16x896xf32> -> vector<16x896xf32>
    %c0_17 = arith.constant 0 : index
    %c0_18 = arith.constant 0 : index
    %25 = vector.load %arg7[%c0_17, %c0_18] : memref<1x896xf32, #tpu.memory_space<vmem>>, vector<1x896xf32>
    %26 = vector.broadcast %25 : vector<1x896xf32> to vector<16x896xf32>
    %27 = arith.addf %24, %26 : vector<16x896xf32>
    %cst_19 = arith.constant 0.000000e+00 : f32
    %28 = vector.broadcast %cst_19 : f32 to vector<16x896xf32>
    %29 = arith.cmpf ogt, %27, %28 : vector<16x896xf32>
    %cst_20 = arith.constant 0.00999999977 : f32
    %30 = vector.broadcast %cst_20 : f32 to vector<16x896xf32>
    %31 = arith.mulf %30, %27 : vector<16x896xf32>
    %32 = arith.select %29, %27, %31 : vector<16x896xi1>, vector<16x896xf32>
    %33 = arith.truncf %32 : vector<16x896xf32> to vector<16x896xbf16>
    %c0_21 = arith.constant 0 : index
    %c0_22 = arith.constant 0 : index
    %34 = vector.load %arg8[%c0_21, %c0_22] : memref<16x896xbf16, #tpu.memory_space<vmem>>, vector<16x896xbf16>
    tpu.vector_store %arg8[%c0_21, %c0_22], %33 {strides = array<i32>} : memref<16x896xbf16, #tpu.memory_space<vmem>>, vector<16x896xbf16>,
    return
  }
  func.func @transform_0(%arg0: i32) -> (i32, i32) {
    %c0_i32 = arith.constant 0 : i32
    %c0_i32_0 = arith.constant 0 : i32
    return %arg0, %c0_i32 : i32, i32
  }
  func.func @transform_1(%arg0: i32) -> (i32, i32) {
    %c0_i32 = arith.constant 0 : i32
    %c0_i32_0 = arith.constant 0 : i32
    %c0_i32_1 = arith.constant 0 : i32
    return %c0_i32, %c0_i32_0 : i32, i32
  }
  func.func @transform_2(%arg0: i32) -> (i32, i32) {
    %c0_i32 = arith.constant 0 : i32
    %c0_i32_0 = arith.constant 0 : i32
    %c0_i32_1 = arith.constant 0 : i32
    return %c0_i32, %c0_i32_0 : i32, i32
  }
  func.func @transform_3(%arg0: i32) -> (i32, i32) {
    %c0_i32 = arith.constant 0 : i32
    %c0_i32_0 = arith.constant 0 : i32
    %c0_i32_1 = arith.constant 0 : i32
    return %c0_i32, %c0_i32_0 : i32, i32
  }
  func.func @transform_4(%arg0: i32) -> (i32, i32) {
    %c0_i32 = arith.constant 0 : i32
    %c0_i32_0 = arith.constant 0 : i32
    %c0_i32_1 = arith.constant 0 : i32
    return %c0_i32, %c0_i32_0 : i32, i32
  }
  func.func @transform_5(%arg0: i32) -> (i32, i32) {
    %c0_i32 = arith.constant 0 : i32
    %c0_i32_0 = arith.constant 0 : i32
    %c0_i32_1 = arith.constant 0 : i32
    return %c0_i32, %c0_i32_0 : i32, i32
  }
  func.func @transform_6(%arg0: i32) -> (i32, i32) {
    %c0_i32 = arith.constant 0 : i32
    %c0_i32_0 = arith.constant 0 : i32
    %c0_i32_1 = arith.constant 0 : i32
    return %c0_i32, %c0_i32_0 : i32, i32
  }
  func.func @transform_7(%arg0: i32) -> (i32, i32) {
    %c0_i32 = arith.constant 0 : i32
    %c0_i32_0 = arith.constant 0 : i32
    return %arg0, %c0_i32 : i32, i32
  }
}

</mosaic_0001>

<llo_original>
// kernel: tpu_custom_call.1
$region0: #{tpu_custom_call.1}
  #allocation0 [shape = 'u32[]', space=smem, size = 0x4, offset = 0x4, fixed_abs, tag = 'smem constant byte address 0x4 - core index']
  #allocation1 [shape = 'u32[144,128]{1,0:T(1,128)}', space=vmem, size = 0x12000, scoped, tag = 'internal scratch']
  %s0 = inlined_call_operand.hbm [shape: bf16[16,128], index: 0, kind: input, shape index: {}]
  %s1 = inlined_call_operand.hbm [shape: bf16[128,128], index: 1, kind: input, shape index: {}]
  %s2 = inlined_call_operand.vmem [shape: f32[1,128], index: 2, kind: input, shape index: {}]
  %s3 = inlined_call_operand.hbm [shape: bf16[128,256], index: 3, kind: input, shape index: {}]
  %s4 = inlined_call_operand.vmem [shape: f32[1,256], index: 4, kind: input, shape index: {}]
  %s5 = inlined_call_operand.hbm [shape: bf16[256,896], index: 5, kind: input, shape index: {}]
  %s6 = inlined_call_operand.vmem [shape: f32[1,896], index: 6, kind: input, shape index: {}]
  %s7 = inlined_call_operand.hbm [shape: bf16[16,896], index: 7, kind: output, shape index: {}]
  %s8 = sld [smem:[#allocation0]]
  $region54: #{tpu_custom_call.1} parent=0
    _
  %s10 = ssub.s32 1, %s8
  %s11 = scalar_select 0, %s10, %s8
  $region1: #{tpu_custom_call.1} parent=0
    #allocation2 [shape = 'u8[4096]{0}', space=vmem, size = 0x1000, scoped, tag = 'input window, operand 0, single buffered']
    #allocation3 [shape = 's32[1]{0}', space=sflag, size = 0x4, scoped, tag = 'scoped memory for tpu_custom_call.1']
    #allocation4 [shape = 's32[1]{0}', space=sflag, size = 0x4, scoped, tag = 'scoped memory for tpu_custom_call.1']
    #allocation5 [shape = 'u8[32768]{0}', space=vmem, size = 0x8000, scoped, tag = 'input window, operand 1, single buffered']
    #allocation6 [shape = 's32[1]{0}', space=sflag, size = 0x4, scoped, tag = 'scoped memory for tpu_custom_call.1']
    #allocation7 [shape = 'u8[65536]{0}', space=vmem, size = 0x10000, scoped, tag = 'input window, operand 3, single buffered']
    #allocation8 [shape = 'u8[458752]{0}', space=vmem, size = 0x70000, scoped, tag = 'input window, operand 5, single buffered']
    #allocation9 [shape = 's32[1]{0}', space=sflag, size = 0x4, scoped, tag = 'scoped memory for tpu_custom_call.1']
    #allocation10 [shape = 'u8[28672]{0}', space=vmem, size = 0x7000, scoped, tag = 'output window, operand 0, single buffered']
    %12 = vsyncpa [#allocation3], 0
    %13 = vsyncpa [#allocation6], 0
    %14 = vsyncpa [#allocation9], 0
    %15 = vsyncpa [#allocation4], 0
    // Predicated region
    $region2: #{tpu_custom_call.1} parent=1 // pred_check
      _
    $region3: #{tpu_custom_call.1} parent=1 // pred_check_branch
      %17 = sbr.rel (0) target = $region5
    $region4: #{tpu_custom_call.1} parent=1 // pred_region
      %s19 = ssub.s32 128, 128
      %20 = vsyncadd [#allocation3], %s19
      %s21 = sshll.u32 [#allocation2], 4
      %s22 = int_to_ptr.vmem [resolvable:$true] %s21
      %27 = dma.hbm_to_vmem [thread:$0]  %s0, 128, %s22, [#allocation3], 64, 64, 4
    $region5: #{tpu_custom_call.1} parent=1 // pred_fallthru
      _
    // Predicated region
    $region6: #{tpu_custom_call.1} parent=1 // pred_check
      _
    $region7: #{tpu_custom_call.1} parent=1 // pred_check_branch
      %29 = sbr.rel (0) target = $region9
    $region8: #{tpu_custom_call.1} parent=1 // pred_region
      %s31 = ssub.s32 1024, 1024
      %32 = vsyncadd [#allocation6], %s31
      %s33 = sshll.u32 [#allocation5], 4
      %s34 = int_to_ptr.vmem [resolvable:$true] %s33
      %39 = dma.hbm_to_vmem [thread:$0]  %s1, 1024, %s34, [#allocation6], 64, 64, 4
    $region9: #{tpu_custom_call.1} parent=1 // pred_fallthru
      _
    // Predicated region
    $region10: #{tpu_custom_call.1} parent=1 // pred_check
      _
    $region11: #{tpu_custom_call.1} parent=1 // pred_check_branch
      %41 = sbr.rel (0) target = $region13
    $region12: #{tpu_custom_call.1} parent=1 // pred_region
      _
    $region13: #{tpu_custom_call.1} parent=1 // pred_fallthru
      _
    // Predicated region
    $region14: #{tpu_custom_call.1} parent=1 // pred_check
      _
    $region15: #{tpu_custom_call.1} parent=1 // pred_check_branch
      %43 = sbr.rel (0) target = $region17
    $region16: #{tpu_custom_call.1} parent=1 // pred_region
      %s45 = ssub.s32 2048, 2048
      %46 = vsyncadd [#allocation6], %s45
      %s47 = sshll.u32 [#allocation7], 4
      %s48 = int_to_ptr.vmem [resolvable:$true] %s47
      %53 = dma.hbm_to_vmem [thread:$0]  %s3, 2048, %s48, [#allocation6], 128, 128, 8
    $region17: #{tpu_custom_call.1} parent=1 // pred_fallthru
      _
    // Predicated region
    $region18: #{tpu_custom_call.1} parent=1 // pred_check
      _
    $region19: #{tpu_custom_call.1} parent=1 // pred_check_branch
      %55 = sbr.rel (0) target = $region21
    $region20: #{tpu_custom_call.1} parent=1 // pred_region
      _
    $region21: #{tpu_custom_call.1} parent=1 // pred_fallthru
      _
    // Predicated region
    $region22: #{tpu_custom_call.1} parent=1 // pred_check
      _
    $region23: #{tpu_custom_call.1} parent=1 // pred_check_branch
      %57 = sbr.rel (0) target = $region25
    $region24: #{tpu_custom_call.1} parent=1 // pred_region
      %s59 = ssub.s32 14336, 14336
      %60 = vsyncadd [#allocation9], %s59
      %s61 = sshll.u32 [#allocation8], 4
      %s62 = int_to_ptr.vmem [resolvable:$true] %s61
      %67 = dma.hbm_to_vmem [thread:$0]  %s5, 14336, %s62, [#allocation9], 448, 448, 28
    $region25: #{tpu_custom_call.1} parent=1 // pred_fallthru
      _
    // Predicated region
    $region26: #{tpu_custom_call.1} parent=1 // pred_check
      _
    $region27: #{tpu_custom_call.1} parent=1 // pred_check_branch
      %69 = sbr.rel (0) target = $region29
    $region28: #{tpu_custom_call.1} parent=1 // pred_region
      _
    $region29: #{tpu_custom_call.1} parent=1 // pred_fallthru
      _
    // Predicated region
    $region30: #{tpu_custom_call.1} parent=1 // pred_check
      _
    $region31: #{tpu_custom_call.1} parent=1 // pred_check_branch
      %71 = sbr.rel (0) target = $region33
    $region32: #{tpu_custom_call.1} parent=1 // pred_region
      %72 = dma.done [#allocation3], 128
    $region33: #{tpu_custom_call.1} parent=1 // pred_fallthru
      _
    // Predicated region
    $region34: #{tpu_custom_call.1} parent=1 // pred_check
      _
    $region35: #{tpu_custom_call.1} parent=1 // pred_check_branch
      %74 = sbr.rel (0) target = $region37
    $region36: #{tpu_custom_call.1} parent=1 // pred_region
      %75 = dma.done [#allocation6], 1024
    $region37: #{tpu_custom_call.1} parent=1 // pred_fallthru
      _
    // Predicated region
    $region38: #{tpu_custom_call.1} parent=1 // pred_check
      _
    $region39: #{tpu_custom_call.1} parent=1 // pred_check_branch
      %77 = sbr.rel (0) target = $region41
    $region40: #{tpu_custom_call.1} parent=1 // pred_region
      %78 = dma.done [#allocation6], 2048
    $region41: #{tpu_custom_call.1} parent=1 // pred_fallthru
      _
    // Predicated region
    $region42: #{tpu_custom_call.1} parent=1 // pred_check
      _
    $region43: #{tpu_custom_call.1} parent=1 // pred_check_branch
      %80 = sbr.rel (0) target = $region45
    $region44: #{tpu_custom_call.1} parent=1 // pred_region
      %81 = dma.done [#allocation9], 14336
    $region45: #{tpu_custom_call.1} parent=1 // pred_fallthru
      _
    %v83 = vld [vmem:[#allocation2] sm:$0xf]
    %v84 = vld [vmem:[#allocation2 + $0x4] sm:$0xf]
    %v85 = vld [vmem:[#allocation5] sm:$0xf]
    %v86 = vld [vmem:[#allocation5 + $0x4] sm:$0xf]
    %v87 = vld [vmem:[#allocation5 + $0x8] sm:$0xf]
    %v88 = vld [vmem:[#allocation5 + $0xc] sm:$0xf]
    %v89 = vld [vmem:[#allocation5 + $0x10] sm:$0xf]
    %v90 = vld [vmem:[#allocation5 + $0x14] sm:$0xf]
    %v91 = vld [vmem:[#allocation5 + $0x18] sm:$0xf]
    %v92 = vld [vmem:[#allocation5 + $0x1c] sm:$0xf]
    %v93 = vld [vmem:[#allocation5 + $0x20] sm:$0xf]
    %v94 = vld [vmem:[#allocation5 + $0x24] sm:$0xf]
    %v95 = vld [vmem:[#allocation5 + $0x28] sm:$0xf]
    %v96 = vld [vmem:[#allocation5 + $0x2c] sm:$0xf]
    %v97 = vld [vmem:[#allocation5 + $0x30] sm:$0xf]
    %v98 = vld [vmem:[#allocation5 + $0x34] sm:$0xf]
    %v99 = vld [vmem:[#allocation5 + $0x38] sm:$0xf]
    %v100 = vld [vmem:[#allocation5 + $0x3c] sm:$0xf]
    %v101 = vld [vmem:[%s2] sm:$0x1]
    %v103 = vlaneseq
    %v104 = vshrl.u32 %v103, 7
    %v105 = vsub.s32 0, %v104
    %v106 = vrot.slane %v101, %v105
    %v110 = vunpack.c.l.b16 %v83
    %v111 = vunpack.c.l.b16 %v84
    %v112 = vpack.c.b16 %v111, %v110
    %v130 = vunpack.c.l.b16 %v85
    %v131 = vunpack.c.l.b16 %v86
    %v132 = vunpack.c.l.b16 %v87
    %v133 = vunpack.c.l.b16 %v88
    %v134 = vunpack.c.l.b16 %v89
    %v135 = vunpack.c.l.b16 %v90
    %v136 = vunpack.c.l.b16 %v91
    %v137 = vunpack.c.l.b16 %v92
    %v138 = vunpack.c.l.b16 %v93
    %v139 = vunpack.c.l.b16 %v94
    %v140 = vunpack.c.l.b16 %v95
    %v141 = vunpack.c.l.b16 %v96
    %v142 = vunpack.c.l.b16 %v97
    %v143 = vunpack.c.l.b16 %v98
    %v144 = vunpack.c.l.b16 %v99
    %v145 = vunpack.c.l.b16 %v100
    %v146 = vpack.c.b16 %v131, %v130
    %v147 = vpack.c.b16 %v133, %v132
    %v148 = vpack.c.b16 %v135, %v134
    %v149 = vpack.c.b16 %v137, %v136
    %v150 = vpack.c.b16 %v139, %v138
    %v151 = vpack.c.b16 %v141, %v140
    %v152 = vpack.c.b16 %v143, %v142
    %v153 = vpack.c.b16 %v145, %v144
    %162 = vmatprep.subr.bf16.mxu0 0
    %163 = vmatpush1.bf16.msra.mxu0 %v146
    %164 = vmatprep.subr.bf16.mxu0 0
    %165 = vmatpush1.bf16.msra.mxu0 %v147
    %166 = vmatprep.subr.bf16.mxu0 0
    %167 = vmatpush1.bf16.msra.mxu0 %v148
    %168 = vmatprep.subr.bf16.mxu0 0
    %169 = vmatpush1.bf16.msra.mxu0 %v149
    %170 = vmatprep.subr.bf16.mxu0 0
    %171 = vmatpush1.bf16.msra.mxu0 %v150
    %172 = vmatprep.subr.bf16.mxu0 0
    %173 = vmatpush1.bf16.msra.mxu0 %v151
    %174 = vmatprep.subr.bf16.mxu0 0
    %175 = vmatpush1.bf16.msra.mxu0 %v152
    %176 = vmatprep.subr.bf16.mxu0 0
    %177 = vmatpush1.bf16.msra.mxu0 %v153
    %178 = vmatprep.subr.bf16.mxu0 0
    %179 = vmatpush1.bf16.msra.mxu0 0
    %180 = vmatprep.subr.bf16.mxu0 0
    %181 = vmatpush1.bf16.msra.mxu0 0
    %182 = vmatprep.subr.bf16.mxu0 0
    %183 = vmatpush1.bf16.msra.mxu0 0
    %184 = vmatprep.subr.bf16.mxu0 0
    %185 = vmatpush1.bf16.msra.mxu0 0
    %186 = vmatprep.subr.bf16.mxu0 0
    %187 = vmatpush1.bf16.msra.mxu0 0
    %188 = vmatprep.subr.bf16.mxu0 0
    %189 = vmatpush1.bf16.msra.mxu0 0
    %190 = vmatprep.subr.bf16.mxu0 0
    %191 = vmatpush1.bf16.msra.mxu0 0
    %192 = vmatprep.subr.bf16.mxu0 0
    %193 = vmatpush1.bf16.msra.mxu0 0
    %194 = vmatprep.mubr.bf16.mxu0 0
    %195 = vmatmul.mubr.bf16.gmra.mrb[0].mxu0 %v112
    %v196 = vpop.f32.mrb[0].mxu0
    %v197 = vadd.f32 %v106, %v196
    %v198 = vpop.f32.mrb[0].mxu0
    %v199 = vpop.f32.mrb[0].mxu0
    %v200 = vadd.f32 %v106, %v199
    %v201 = vpop.f32.mrb[0].mxu0
    %202 = vdwg.mxu0
    %vm203 = vcmp.gt.f32.partialorder %v197, 0.0
    %vm204 = vcmp.gt.f32.partialorder %v200, 0.0
    %v205 = vmul.f32 %v197, 0.01
    %v206 = vmul.f32 %v200, 0.01
    %v207 = vsel %vm203, %v197, %v205
    %v208 = vsel %vm204, %v200, %v206
    %v209 = vpack.c.bf16 %v208, %v207
    %v210 = vld [vmem:[#allocation7] sm:$0xff]
    %v211 = vld [vmem:[#allocation7 + $0x8] sm:$0xff]
    %v212 = vld [vmem:[#allocation7 + $0x10] sm:$0xff]
    %v213 = vld [vmem:[#allocation7 + $0x18] sm:$0xff]
    %v214 = vld [vmem:[#allocation7 + $0x20] sm:$0xff]
    %v215 = vld [vmem:[#allocation7 + $0x28] sm:$0xff]
    %v216 = vld [vmem:[#allocation7 + $0x30] sm:$0xff]
    %v217 = vld [vmem:[#allocation7 + $0x38] sm:$0xff]
    %v218 = vld [vmem:[#allocation7 + $0x40] sm:$0xff]
    %v219 = vld [vmem:[#allocation7 + $0x48] sm:$0xff]
    %v220 = vld [vmem:[#allocation7 + $0x50] sm:$0xff]
    %v221 = vld [vmem:[#allocation7 + $0x58] sm:$0xff]
    %v222 = vld [vmem:[#allocation7 + $0x60] sm:$0xff]
    %v223 = vld [vmem:[#allocation7 + $0x68] sm:$0xff]
    %v224 = vld [vmem:[#allocation7 + $0x70] sm:$0xff]
    %v225 = vld [vmem:[#allocation7 + $0x78] sm:$0xff]
    %v226 = vld [vmem:[%s4] sm:$0x3]
    %v228 = vlaneseq
    %v229 = vshrl.u32 %v228, 7
    %v230 = vsub.s32 0, %v229
    %v231 = vrot.slane %v226, %v230
    %v232 = vlaneseq
    %v233 = vshrl.u32 %v232, 7
    %v234 = vsub.s32 1, %v233
    %v235 = vrot.slane %v226, %v234
    %v254 = vunpack.c.l.b16 %v210
    %v255 = vunpack.c.h.b16 %v210
    %v256 = vunpack.c.l.b16 %v211
    %v257 = vunpack.c.h.b16 %v211
    %v258 = vunpack.c.l.b16 %v212
    %v259 = vunpack.c.h.b16 %v212
    %v260 = vunpack.c.l.b16 %v213
    %v261 = vunpack.c.h.b16 %v213
    %v262 = vunpack.c.l.b16 %v214
    %v263 = vunpack.c.h.b16 %v214
    %v264 = vunpack.c.l.b16 %v215
    %v265 = vunpack.c.h.b16 %v215
    %v266 = vunpack.c.l.b16 %v216
    %v267 = vunpack.c.h.b16 %v216
    %v268 = vunpack.c.l.b16 %v217
    %v269 = vunpack.c.h.b16 %v217
    %v270 = vunpack.c.l.b16 %v218
    %v271 = vunpack.c.h.b16 %v218
    %v272 = vunpack.c.l.b16 %v219
    %v273 = vunpack.c.h.b16 %v219
    %v274 = vunpack.c.l.b16 %v220
    %v275 = vunpack.c.h.b16 %v220
    %v276 = vunpack.c.l.b16 %v221
    %v277 = vunpack.c.h.b16 %v221
    %v278 = vunpack.c.l.b16 %v222
    %v279 = vunpack.c.h.b16 %v222
    %v280 = vunpack.c.l.b16 %v223
    %v281 = vunpack.c.h.b16 %v223
    %v282 = vunpack.c.l.b16 %v224
    %v283 = vunpack.c.h.b16 %v224
    %v284 = vunpack.c.l.b16 %v225
    %v285 = vunpack.c.h.b16 %v225
    %v286 = vpack.c.b16 %v256, %v254
    %v287 = vpack.c.b16 %v257, %v255
    %v288 = vpack.c.b16 %v260, %v258
    %v289 = vpack.c.b16 %v261, %v259
    %v290 = vpack.c.b16 %v264, %v262
    %v291 = vpack.c.b16 %v265, %v263
    %v292 = vpack.c.b16 %v268, %v266
    %v293 = vpack.c.b16 %v269, %v267
    %v294 = vpack.c.b16 %v272, %v270
    %v295 = vpack.c.b16 %v273, %v271
    %v296 = vpack.c.b16 %v276, %v274
    %v297 = vpack.c.b16 %v277, %v275
    %v298 = vpack.c.b16 %v280, %v278
    %v299 = vpack.c.b16 %v281, %v279
    %v300 = vpack.c.b16 %v284, %v282
    %v301 = vpack.c.b16 %v285, %v283
    %318 = vmatprep.subr.bf16.mxu0 %v287
    %319 = vmatpush1.bf16.msra.mxu0 %v286
    %320 = vmatprep.subr.bf16.mxu0 %v289
    %321 = vmatpush1.bf16.msra.mxu0 %v288
    %322 = vmatprep.subr.bf16.mxu0 %v291
    %323 = vmatpush1.bf16.msra.mxu0 %v290
    %324 = vmatprep.subr.bf16.mxu0 %v293
    %325 = vmatpush1.bf16.msra.mxu0 %v292
    %326 = vmatprep.subr.bf16.mxu0 %v295
    %327 = vmatpush1.bf16.msra.mxu0 %v294
    %328 = vmatprep.subr.bf16.mxu0 %v297
    %329 = vmatpush1.bf16.msra.mxu0 %v296
    %330 = vmatprep.subr.bf16.mxu0 %v299
    %331 = vmatpush1.bf16.msra.mxu0 %v298
    %332 = vmatprep.subr.bf16.mxu0 %v301
    %333 = vmatpush1.bf16.msra.mxu0 %v300
    %334 = vmatprep.subr.bf16.mxu0 0
    %335 = vmatpush1.bf16.msra.mxu0 0
    %336 = vmatprep.subr.bf16.mxu0 0
    %337 = vmatpush1.bf16.msra.mxu0 0
    %338 = vmatprep.subr.bf16.mxu0 0
    %339 = vmatpush1.bf16.msra.mxu0 0
    %340 = vmatprep.subr.bf16.mxu0 0
    %341 = vmatpush1.bf16.msra.mxu0 0
    %342 = vmatprep.subr.bf16.mxu0 0
    %343 = vmatpush1.bf16.msra.mxu0 0
    %344 = vmatprep.subr.bf16.mxu0 0
    %345 = vmatpush1.bf16.msra.mxu0 0
    %346 = vmatprep.subr.bf16.mxu0 0
    %347 = vmatpush1.bf16.msra.mxu0 0
    %348 = vmatprep.subr.bf16.mxu0 0
    %349 = vmatpush1.bf16.msra.mxu0 0
    %350 = vmatprep.mubr.bf16.mxu0 0
    %351 = vmatmul.mubr.bf16.gmra.mrb[0].mxu0 %v209
    %v352 = vpop.f32.mrb[0].mxu0
    %v353 = vadd.f32 %v231, %v352
    %v354 = vpop.f32.mrb[0].mxu0
    %v355 = vadd.f32 %v235, %v354
    %v356 = vpop.f32.mrb[0].mxu0
    %v357 = vadd.f32 %v231, %v356
    %v358 = vpop.f32.mrb[0].mxu0
    %v359 = vadd.f32 %v235, %v358
    %360 = vdwg.mxu0
    %vm361 = vcmp.gt.f32.partialorder %v353, 0.0
    %vm362 = vcmp.gt.f32.partialorder %v355, 0.0
    %vm363 = vcmp.gt.f32.partialorder %v357, 0.0
    %vm364 = vcmp.gt.f32.partialorder %v359, 0.0
    %v365 = vmul.f32 %v353, 0.01
    %v366 = vmul.f32 %v355, 0.01
    %v367 = vmul.f32 %v357, 0.01
    %v368 = vmul.f32 %v359, 0.01
    %v369 = vsel %vm361, %v353, %v365
    %v370 = vsel %vm362, %v355, %v366
    %v371 = vsel %vm363, %v357, %v367
    %v372 = vsel %vm364, %v359, %v368
    %v373 = vpack.c.bf16 %v371, %v369
    %v374 = vpack.c.bf16 %v372, %v370
    %v375 = vld [vmem:[#allocation8] sm:$0xff]
    %v376 = vld [vmem:[#allocation8 + $0x8] sm:$0xff]
    %v377 = vld [vmem:[#allocation8 + $0x10] sm:$0xff]
    %v378 = vld [vmem:[#allocation8 + $0x18] sm:$0xf]
    %v379 = vld [vmem:[#allocation8 + $0x1c] sm:$0xff]
    %v380 = vld [vmem:[#allocation8 + $0x24] sm:$0xff]
    %v381 = vld [vmem:[#allocation8 + $0x2c] sm:$0xff]
    %v382 = vld [vmem:[#allocation8 + $0x34] sm:$0xf]
    %v383 = vld [vmem:[#allocation8 + $0x38] sm:$0xff]
    %v384 = vld [vmem:[#allocation8 + $0x40] sm:$0xff]
    %v385 = vld [vmem:[#allocation8 + $0x48] sm:$0xff]
    %v386 = vld [vmem:[#allocation8 + $0x50] sm:$0xf]
    %v387 = vld [vmem:[#allocation8 + $0x54] sm:$0xff]
    %v388 = vld [vmem:[#allocation8 + $0x5c] sm:$0xff]
    %v389 = vld [vmem:[#allocation8 + $0x64] sm:$0xff]
    %v390 = vld [vmem:[#allocation8 + $0x6c] sm:$0xf]
    %v391 = vld [vmem:[#allocation8 + $0x70] sm:$0xff]
    %v392 = vld [vmem:[#allocation8 + $0x78] sm:$0xff]
    %v393 = vld [vmem:[#allocation8 + $0x80] sm:$0xff]
    %v394 = vld [vmem:[#allocation8 + $0x88] sm:$0xf]
    %v395 = vld [vmem:[#allocation8 + $0x8c] sm:$0xff]
    %v396 = vld [vmem:[#allocation8 + $0x94] sm:$0xff]
    %v397 = vld [vmem:[#allocation8 + $0x9c] sm:$0xff]
    %v398 = vld [vmem:[#allocation8 + $0xa4] sm:$0xf]
    %v399 = vld [vmem:[#allocation8 + $0xa8] sm:$0xff]
    %v400 = vld [vmem:[#allocation8 + $0xb0] sm:$0xff]
    %v401 = vld [vmem:[#allocation8 + $0xb8] sm:$0xff]
    %v402 = vld [vmem:[#allocation8 + $0xc0] sm:$0xf]
    %v403 = vld [vmem:[#allocation8 + $0xc4] sm:$0xff]
    %v404 = vld [vmem:[#allocation8 + $0xcc] sm:$0xff]
    %v405 = vld [vmem:[#allocation8 + $0xd4] sm:$0xff]
    %v406 = vld [vmem:[#allocation8 + $0xdc] sm:$0xf]
    %v407 = vld [vmem:[#allocation8 + $0xe0] sm:$0xff]
    %v408 = vld [vmem:[#allocation8 + $0xe8] sm:$0xff]
    %v409 = vld [vmem:[#allocation8 + $0xf0] sm:$0xff]
    %v410 = vld [vmem:[#allocation8 + $0xf8] sm:$0xf]
    %v411 = vld [vmem:[#allocation8 + $0xfc] sm:$0xff]
    %v412 = vld [vmem:[#allocation8 + $0x104] sm:$0xff]
    %v413 = vld [vmem:[#allocation8 + $0x10c] sm:$0xff]
    %v414 = vld [vmem:[#allocation8 + $0x114] sm:$0xf]
    %v415 = vld [vmem:[#allocation8 + $0x118] sm:$0xff]
    %v416 = vld [vmem:[#allocation8 + $0x120] sm:$0xff]
    %v417 = vld [vmem:[#allocation8 + $0x128] sm:$0xff]
    %v418 = vld [vmem:[#allocation8 + $0x130] sm:$0xf]
    %v419 = vld [vmem:[#allocation8 + $0x134] sm:$0xff]
    %v420 = vld [vmem:[#allocation8 + $0x13c] sm:$0xff]
    %v421 = vld [vmem:[#allocation8 + $0x144] sm:$0xff]
    %v422 = vld [vmem:[#allocation8 + $0x14c] sm:$0xf]
    %v423 = vld [vmem:[#allocation8 + $0x150] sm:$0xff]
    %v424 = vld [vmem:[#allocation8 + $0x158] sm:$0xff]
    %v425 = vld [vmem:[#allocation8 + $0x160] sm:$0xff]
    %v426 = vld [vmem:[#allocation8 + $0x168] sm:$0xf]
    %v427 = vld [vmem:[#allocation8 + $0x16c] sm:$0xff]
    %v428 = vld [vmem:[#allocation8 + $0x174] sm:$0xff]
    %v429 = vld [vmem:[#allocation8 + $0x17c] sm:$0xff]
    %v430 = vld [vmem:[#allocation8 + $0x184] sm:$0xf]
    %v431 = vld [vmem:[#allocation8 + $0x188] sm:$0xff]
    %v432 = vld [vmem:[#allocation8 + $0x190] sm:$0xff]
    %v433 = vld [vmem:[#allocation8 + $0x198] sm:$0xff]
    %v434 = vld [vmem:[#allocation8 + $0x1a0] sm:$0xf]
    %v435 = vld [vmem:[#allocation8 + $0x1a4] sm:$0xff]
    %v436 = vld [vmem:[#allocation8 + $0x1ac] sm:$0xff]
    %v437 = vld [vmem:[#allocation8 + $0x1b4] sm:$0xff]
    %v438 = vld [vmem:[#allocation8 + $0x1bc] sm:$0xf]
    %v439 = vld [vmem:[#allocation8 + $0x1c0] sm:$0xff]
    %v440 = vld [vmem:[#allocation8 + $0x1c8] sm:$0xff]
    %v441 = vld [vmem:[#allocation8 + $0x1d0] sm:$0xff]
    %v442 = vld [vmem:[#allocation8 + $0x1d8] sm:$0xf]
    %v443 = vld [vmem:[#allocation8 + $0x1dc] sm:$0xff]
    %v444 = vld [vmem:[#allocation8 + $0x1e4] sm:$0xff]
    %v445 = vld [vmem:[#allocation8 + $0x1ec] sm:$0xff]
    %v446 = vld [vmem:[#allocation8 + $0x1f4] sm:$0xf]
    %v447 = vld [vmem:[#allocation8 + $0x1f8] sm:$0xff]
    %v448 = vld [vmem:[#allocation8 + $0x200] sm:$0xff]
    %v449 = vld [vmem:[#allocation8 + $0x208] sm:$0xff]
    %v450 = vld [vmem:[#allocation8 + $0x210] sm:$0xf]
    %v451 = vld [vmem:[#allocation8 + $0x214] sm:$0xff]
    %v452 = vld [vmem:[#allocation8 + $0x21c] sm:$0xff]
    %v453 = vld [vmem:[#allocation8 + $0x224] sm:$0xff]
    %v454 = vld [vmem:[#allocation8 + $0x22c] sm:$0xf]
    %v455 = vld [vmem:[#allocation8 + $0x230] sm:$0xff]
    %v456 = vld [vmem:[#allocation8 + $0x238] sm:$0xff]
    %v457 = vld [vmem:[#allocation8 + $0x240] sm:$0xff]
    %v458 = vld [vmem:[#allocation8 + $0x248] sm:$0xf]
    %v459 = vld [vmem:[#allocation8 + $0x24c] sm:$0xff]
    %v460 = vld [vmem:[#allocation8 + $0x254] sm:$0xff]
    %v461 = vld [vmem:[#allocation8 + $0x25c] sm:$0xff]
    %v462 = vld [vmem:[#allocation8 + $0x264] sm:$0xf]
    %v463 = vld [vmem:[#allocation8 + $0x268] sm:$0xff]
    %v464 = vld [vmem:[#allocation8 + $0x270] sm:$0xff]
    %v465 = vld [vmem:[#allocation8 + $0x278] sm:$0xff]
    %v466 = vld [vmem:[#allocation8 + $0x280] sm:$0xf]
    %v467 = vld [vmem:[#allocation8 + $0x284] sm:$0xff]
    %v468 = vld [vmem:[#allocation8 + $0x28c] sm:$0xff]
    %v469 = vld [vmem:[#allocation8 + $0x294] sm:$0xff]
    %v470 = vld [vmem:[#allocation8 + $0x29c] sm:$0xf]
    %v471 = vld [vmem:[#allocation8 + $0x2a0] sm:$0xff]
    %v472 = vld [vmem:[#allocation8 + $0x2a8] sm:$0xff]
    %v473 = vld [vmem:[#allocation8 + $0x2b0] sm:$0xff]
    %v474 = vld [vmem:[#allocation8 + $0x2b8] sm:$0xf]
    %v475 = vld [vmem:[#allocation8 + $0x2bc] sm:$0xff]
    %v476 = vld [vmem:[#allocation8 + $0x2c4] sm:$0xff]
    %v477 = vld [vmem:[#allocation8 + $0x2cc] sm:$0xff]
    %v478 = vld [vmem:[#allocation8 + $0x2d4] sm:$0xf]
    %v479 = vld [vmem:[#allocation8 + $0x2d8] sm:$0xff]
    %v480 = vld [vmem:[#allocation8 + $0x2e0] sm:$0xff]
    %v481 = vld [vmem:[#allocation8 + $0x2e8] sm:$0xff]
    %v482 = vld [vmem:[#allocation8 + $0x2f0] sm:$0xf]
    %v483 = vld [vmem:[#allocation8 + $0x2f4] sm:$0xff]
    %v484 = vld [vmem:[#allocation8 + $0x2fc] sm:$0xff]
    %v485 = vld [vmem:[#allocation8 + $0x304] sm:$0xff]
    %v486 = vld [vmem:[#allocation8 + $0x30c] sm:$0xf]
    %v487 = vld [vmem:[#allocation8 + $0x310] sm:$0xff]
    %v488 = vld [vmem:[#allocation8 + $0x318] sm:$0xff]
    %v489 = vld [vmem:[#allocation8 + $0x320] sm:$0xff]
    %v490 = vld [vmem:[#allocation8 + $0x328] sm:$0xf]
    %v491 = vld [vmem:[#allocation8 + $0x32c] sm:$0xff]
    %v492 = vld [vmem:[#allocation8 + $0x334] sm:$0xff]
    %v493 = vld [vmem:[#allocation8 + $0x33c] sm:$0xff]
    %v494 = vld [vmem:[#allocation8 + $0x344] sm:$0xf]
    %v495 = vld [vmem:[#allocation8 + $0x348] sm:$0xff]
    %v496 = vld [vmem:[#allocation8 + $0x350] sm:$0xff]
    %v497 = vld [vmem:[#allocation8 + $0x358] sm:$0xff]
    %v498 = vld [vmem:[#allocation8 + $0x360] sm:$0xf]
    %v499 = vld [vmem:[#allocation8 + $0x364] sm:$0xff]
    %v500 = vld [vmem:[#allocation8 + $0x36c] sm:$0xff]
    %v501 = vld [vmem:[#allocation8 + $0x374] sm:$0xff]
    %v502 = vld [vmem:[#allocation8 + $0x37c] sm:$0xf]
    %v503 = vld [vmem:[%s6] sm:$0xff]
    %v505 = vlaneseq
    %v506 = vshrl.u32 %v505, 7
    %v507 = vsub.s32 0, %v506
    %v508 = vrot.slane %v503, %v507
    %v509 = vlaneseq
    %v510 = vshrl.u32 %v509, 7
    %v511 = vsub.s32 1, %v510
    %v512 = vrot.slane %v503, %v511
    %v513 = vlaneseq
    %v514 = vshrl.u32 %v513, 7
    %v515 = vsub.s32 2, %v514
    %v516 = vrot.slane %v503, %v515
    %v517 = vlaneseq
    %v518 = vshrl.u32 %v517, 7
    %v519 = vsub.s32 3, %v518
    %v520 = vrot.slane %v503, %v519
    %v521 = vlaneseq
    %v522 = vshrl.u32 %v521, 7
    %v523 = vsub.s32 4, %v522
    %v524 = vrot.slane %v503, %v523
    %v525 = vlaneseq
    %v526 = vshrl.u32 %v525, 7
    %v527 = vsub.s32 5, %v526
    %v528 = vrot.slane %v503, %v527
    %v529 = vlaneseq
    %v530 = vshrl.u32 %v529, 7
    %v531 = vsub.s32 6, %v530
    %v532 = vrot.slane %v503, %v531
    %v668 = vunpack.c.l.b16 %v375
    %v669 = vunpack.c.h.b16 %v375
    %v670 = vunpack.c.l.b16 %v376
    %v671 = vunpack.c.h.b16 %v376
    %v672 = vunpack.c.l.b16 %v377
    %v673 = vunpack.c.h.b16 %v377
    %v674 = vunpack.c.l.b16 %v378
    %v675 = vunpack.c.l.b16 %v379
    %v676 = vunpack.c.h.b16 %v379
    %v677 = vunpack.c.l.b16 %v380
    %v678 = vunpack.c.h.b16 %v380
    %v679 = vunpack.c.l.b16 %v381
    %v680 = vunpack.c.h.b16 %v381
    %v681 = vunpack.c.l.b16 %v382
    %v682 = vunpack.c.l.b16 %v383
    %v683 = vunpack.c.h.b16 %v383
    %v684 = vunpack.c.l.b16 %v384
    %v685 = vunpack.c.h.b16 %v384
    %v686 = vunpack.c.l.b16 %v385
    %v687 = vunpack.c.h.b16 %v385
    %v688 = vunpack.c.l.b16 %v386
    %v689 = vunpack.c.l.b16 %v387
    %v690 = vunpack.c.h.b16 %v387
    %v691 = vunpack.c.l.b16 %v388
    %v692 = vunpack.c.h.b16 %v388
    %v693 = vunpack.c.l.b16 %v389
    %v694 = vunpack.c.h.b16 %v389
    %v695 = vunpack.c.l.b16 %v390
    %v696 = vunpack.c.l.b16 %v391
    %v697 = vunpack.c.h.b16 %v391
    %v698 = vunpack.c.l.b16 %v392
    %v699 = vunpack.c.h.b16 %v392
    %v700 = vunpack.c.l.b16 %v393
    %v701 = vunpack.c.h.b16 %v393
    %v702 = vunpack.c.l.b16 %v394
    %v703 = vunpack.c.l.b16 %v395
    %v704 = vunpack.c.h.b16 %v395
    %v705 = vunpack.c.l.b16 %v396
    %v706 = vunpack.c.h.b16 %v396
    %v707 = vunpack.c.l.b16 %v397
    %v708 = vunpack.c.h.b16 %v397
    %v709 = vunpack.c.l.b16 %v398
    %v710 = vunpack.c.l.b16 %v399
    %v711 = vunpack.c.h.b16 %v399
    %v712 = vunpack.c.l.b16 %v400
    %v713 = vunpack.c.h.b16 %v400
    %v714 = vunpack.c.l.b16 %v401
    %v715 = vunpack.c.h.b16 %v401
    %v716 = vunpack.c.l.b16 %v402
    %v717 = vunpack.c.l.b16 %v403
    %v718 = vunpack.c.h.b16 %v403
    %v719 = vunpack.c.l.b16 %v404
    %v720 = vunpack.c.h.b16 %v404
    %v721 = vunpack.c.l.b16 %v405
    %v722 = vunpack.c.h.b16 %v405
    %v723 = vunpack.c.l.b16 %v406
    %v724 = vunpack.c.l.b16 %v407
    %v725 = vunpack.c.h.b16 %v407
    %v726 = vunpack.c.l.b16 %v408
    %v727 = vunpack.c.h.b16 %v408
    %v728 = vunpack.c.l.b16 %v409
    %v729 = vunpack.c.h.b16 %v409
    %v730 = vunpack.c.l.b16 %v410
    %v731 = vunpack.c.l.b16 %v411
    %v732 = vunpack.c.h.b16 %v411
    %v733 = vunpack.c.l.b16 %v412
    %v734 = vunpack.c.h.b16 %v412
    %v735 = vunpack.c.l.b16 %v413
    %v736 = vunpack.c.h.b16 %v413
    %v737 = vunpack.c.l.b16 %v414
    %v738 = vunpack.c.l.b16 %v415
    %v739 = vunpack.c.h.b16 %v415
    %v740 = vunpack.c.l.b16 %v416
    %v741 = vunpack.c.h.b16 %v416
    %v742 = vunpack.c.l.b16 %v417
    %v743 = vunpack.c.h.b16 %v417
    %v744 = vunpack.c.l.b16 %v418
    %v745 = vunpack.c.l.b16 %v419
    %v746 = vunpack.c.h.b16 %v419
    %v747 = vunpack.c.l.b16 %v420
    %v748 = vunpack.c.h.b16 %v420
    %v749 = vunpack.c.l.b16 %v421
    %v750 = vunpack.c.h.b16 %v421
    %v751 = vunpack.c.l.b16 %v422
    %v752 = vunpack.c.l.b16 %v423
    %v753 = vunpack.c.h.b16 %v423
    %v754 = vunpack.c.l.b16 %v424
    %v755 = vunpack.c.h.b16 %v424
    %v756 = vunpack.c.l.b16 %v425
    %v757 = vunpack.c.h.b16 %v425
    %v758 = vunpack.c.l.b16 %v426
    %v759 = vunpack.c.l.b16 %v427
    %v760 = vunpack.c.h.b16 %v427
    %v761 = vunpack.c.l.b16 %v428
    %v762 = vunpack.c.h.b16 %v428
    %v763 = vunpack.c.l.b16 %v429
    %v764 = vunpack.c.h.b16 %v429
    %v765 = vunpack.c.l.b16 %v430
    %v766 = vunpack.c.l.b16 %v431
    %v767 = vunpack.c.h.b16 %v431
    %v768 = vunpack.c.l.b16 %v432
    %v769 = vunpack.c.h.b16 %v432
    %v770 = vunpack.c.l.b16 %v433
    %v771 = vunpack.c.h.b16 %v433
    %v772 = vunpack.c.l.b16 %v434
    %v773 = vunpack.c.l.b16 %v435
    %v774 = vunpack.c.h.b16 %v435
    %v775 = vunpack.c.l.b16 %v436
    %v776 = vunpack.c.h.b16 %v436
    %v777 = vunpack.c.l.b16 %v437
    %v778 = vunpack.c.h.b16 %v437
    %v779 = vunpack.c.l.b16 %v438
    %v780 = vunpack.c.l.b16 %v439
    %v781 = vunpack.c.h.b16 %v439
    %v782 = vunpack.c.l.b16 %v440
    %v783 = vunpack.c.h.b16 %v440
    %v784 = vunpack.c.l.b16 %v441
    %v785 = vunpack.c.h.b16 %v441
    %v786 = vunpack.c.l.b16 %v442
    %v787 = vunpack.c.l.b16 %v443
    %v788 = vunpack.c.h.b16 %v443
    %v789 = vunpack.c.l.b16 %v444
    %v790 = vunpack.c.h.b16 %v444
    %v791 = vunpack.c.l.b16 %v445
    %v792 = vunpack.c.h.b16 %v445
    %v793 = vunpack.c.l.b16 %v446
    %v794 = vunpack.c.l.b16 %v447
    %v795 = vunpack.c.h.b16 %v447
    %v796 = vunpack.c.l.b16 %v448
    %v797 = vunpack.c.h.b16 %v448
    %v798 = vunpack.c.l.b16 %v449
    %v799 = vunpack.c.h.b16 %v449
    %v800 = vunpack.c.l.b16 %v450
    %v801 = vunpack.c.l.b16 %v451
    %v802 = vunpack.c.h.b16 %v451
    %v803 = vunpack.c.l.b16 %v452
    %v804 = vunpack.c.h.b16 %v452
    %v805 = vunpack.c.l.b16 %v453
    %v806 = vunpack.c.h.b16 %v453
    %v807 = vunpack.c.l.b16 %v454
    %v808 = vunpack.c.l.b16 %v455
    %v809 = vunpack.c.h.b16 %v455
    %v810 = vunpack.c.l.b16 %v456
    %v811 = vunpack.c.h.b16 %v456
    %v812 = vunpack.c.l.b16 %v457
    %v813 = vunpack.c.h.b16 %v457
    %v814 = vunpack.c.l.b16 %v458
    %v815 = vunpack.c.l.b16 %v459
    %v816 = vunpack.c.h.b16 %v459
    %v817 = vunpack.c.l.b16 %v460
    %v818 = vunpack.c.h.b16 %v460
    %v819 = vunpack.c.l.b16 %v461
    %v820 = vunpack.c.h.b16 %v461
    %v821 = vunpack.c.l.b16 %v462
    %v822 = vunpack.c.l.b16 %v463
    %v823 = vunpack.c.h.b16 %v463
    %v824 = vunpack.c.l.b16 %v464
    %v825 = vunpack.c.h.b16 %v464
    %v826 = vunpack.c.l.b16 %v465
    %v827 = vunpack.c.h.b16 %v465
    %v828 = vunpack.c.l.b16 %v466
    %v829 = vunpack.c.l.b16 %v467
    %v830 = vunpack.c.h.b16 %v467
    %v831 = vunpack.c.l.b16 %v468
    %v832 = vunpack.c.h.b16 %v468
    %v833 = vunpack.c.l.b16 %v469
    %v834 = vunpack.c.h.b16 %v469
    %v835 = vunpack.c.l.b16 %v470
    %v836 = vunpack.c.l.b16 %v471
    %v837 = vunpack.c.h.b16 %v471
    %v838 = vunpack.c.l.b16 %v472
    %v839 = vunpack.c.h.b16 %v472
    %v840 = vunpack.c.l.b16 %v473
    %v841 = vunpack.c.h.b16 %v473
    %v842 = vunpack.c.l.b16 %v474
    %v843 = vunpack.c.l.b16 %v475
    %v844 = vunpack.c.h.b16 %v475
    %v845 = vunpack.c.l.b16 %v476
    %v846 = vunpack.c.h.b16 %v476
    %v847 = vunpack.c.l.b16 %v477
    %v848 = vunpack.c.h.b16 %v477
    %v849 = vunpack.c.l.b16 %v478
    %v850 = vunpack.c.l.b16 %v479
    %v851 = vunpack.c.h.b16 %v479
    %v852 = vunpack.c.l.b16 %v480
    %v853 = vunpack.c.h.b16 %v480
    %v854 = vunpack.c.l.b16 %v481
    %v855 = vunpack.c.h.b16 %v481
    %v856 = vunpack.c.l.b16 %v482
    %v857 = vunpack.c.l.b16 %v483
    %v858 = vunpack.c.h.b16 %v483
    %v859 = vunpack.c.l.b16 %v484
    %v860 = vunpack.c.h.b16 %v484
    %v861 = vunpack.c.l.b16 %v485
    %v862 = vunpack.c.h.b16 %v485
    %v863 = vunpack.c.l.b16 %v486
    %v864 = vunpack.c.l.b16 %v487
    %v865 = vunpack.c.h.b16 %v487
    %v866 = vunpack.c.l.b16 %v488
    %v867 = vunpack.c.h.b16 %v488
    %v868 = vunpack.c.l.b16 %v489
    %v869 = vunpack.c.h.b16 %v489
    %v870 = vunpack.c.l.b16 %v490
    %v871 = vunpack.c.l.b16 %v491
    %v872 = vunpack.c.h.b16 %v491
    %v873 = vunpack.c.l.b16 %v492
    %v874 = vunpack.c.h.b16 %v492
    %v875 = vunpack.c.l.b16 %v493
    %v876 = vunpack.c.h.b16 %v493
    %v877 = vunpack.c.l.b16 %v494
    %v878 = vunpack.c.l.b16 %v495
    %v879 = vunpack.c.h.b16 %v495
    %v880 = vunpack.c.l.b16 %v496
    %v881 = vunpack.c.h.b16 %v496
    %v882 = vunpack.c.l.b16 %v497
    %v883 = vunpack.c.h.b16 %v497
    %v884 = vunpack.c.l.b16 %v498
    %v885 = vunpack.c.l.b16 %v499
    %v886 = vunpack.c.h.b16 %v499
    %v887 = vunpack.c.l.b16 %v500
    %v888 = vunpack.c.h.b16 %v500
    %v889 = vunpack.c.l.b16 %v501
    %v890 = vunpack.c.h.b16 %v501
    %v891 = vunpack.c.l.b16 %v502
    %v892 = vpack.c.b16 %v675, %v668
    %v893 = vpack.c.b16 %v676, %v669
    %v894 = vpack.c.b16 %v677, %v670
    %v895 = vpack.c.b16 %v678, %v671
    %v896 = vpack.c.b16 %v679, %v672
    %v897 = vpack.c.b16 %v680, %v673
    %v898 = vpack.c.b16 %v681, %v674
    %v899 = vpack.c.b16 %v689, %v682
    %v900 = vpack.c.b16 %v690, %v683
    %v901 = vpack.c.b16 %v691, %v684
    %v902 = vpack.c.b16 %v692, %v685
    %v903 = vpack.c.b16 %v693, %v686
    %v904 = vpack.c.b16 %v694, %v687
    %v905 = vpack.c.b16 %v695, %v688
    %v906 = vpack.c.b16 %v703, %v696
    %v907 = vpack.c.b16 %v704, %v697
    %v908 = vpack.c.b16 %v705, %v698
    %v909 = vpack.c.b16 %v706, %v699
    %v910 = vpack.c.b16 %v707, %v700
    %v911 = vpack.c.b16 %v708, %v701
    %v912 = vpack.c.b16 %v709, %v702
    %v913 = vpack.c.b16 %v717, %v710
    %v914 = vpack.c.b16 %v718, %v711
    %v915 = vpack.c.b16 %v719, %v712
    %v916 = vpack.c.b16 %v720, %v713
    %v917 = vpack.c.b16 %v721, %v714
    %v918 = vpack.c.b16 %v722, %v715
    %v919 = vpack.c.b16 %v723, %v716
    %v920 = vpack.c.b16 %v731, %v724
    %v921 = vpack.c.b16 %v732, %v725
    %v922 = vpack.c.b16 %v733, %v726
    %v923 = vpack.c.b16 %v734, %v727
    %v924 = vpack.c.b16 %v735, %v728
    %v925 = vpack.c.b16 %v736, %v729
    %v926 = vpack.c.b16 %v737, %v730
    %v927 = vpack.c.b16 %v745, %v738
    %v928 = vpack.c.b16 %v746, %v739
    %v929 = vpack.c.b16 %v747, %v740
    %v930 = vpack.c.b16 %v748, %v741
    %v931 = vpack.c.b16 %v749, %v742
    %v932 = vpack.c.b16 %v750, %v743
    %v933 = vpack.c.b16 %v751, %v744
    %v934 = vpack.c.b16 %v759, %v752
    %v935 = vpack.c.b16 %v760, %v753
    %v936 = vpack.c.b16 %v761, %v754
    %v937 = vpack.c.b16 %v762, %v755
    %v938 = vpack.c.b16 %v763, %v756
    %v939 = vpack.c.b16 %v764, %v757
    %v940 = vpack.c.b16 %v765, %v758
    %v941 = vpack.c.b16 %v773, %v766
    %v942 = vpack.c.b16 %v774, %v767
    %v943 = vpack.c.b16 %v775, %v768
    %v944 = vpack.c.b16 %v776, %v769
    %v945 = vpack.c.b16 %v777, %v770
    %v946 = vpack.c.b16 %v778, %v771
    %v947 = vpack.c.b16 %v779, %v772
    %v948 = vpack.c.b16 %v787, %v780
    %v949 = vpack.c.b16 %v788, %v781
    %v950 = vpack.c.b16 %v789, %v782
    %v951 = vpack.c.b16 %v790, %v783
    %v952 = vpack.c.b16 %v791, %v784
    %v953 = vpack.c.b16 %v792, %v785
    %v954 = vpack.c.b16 %v793, %v786
    %v955 = vpack.c.b16 %v801, %v794
    %v956 = vpack.c.b16 %v802, %v795
    %v957 = vpack.c.b16 %v803, %v796
    %v958 = vpack.c.b16 %v804, %v797
    %v959 = vpack.c.b16 %v805, %v798
    %v960 = vpack.c.b16 %v806, %v799
    %v961 = vpack.c.b16 %v807, %v800
    %v962 = vpack.c.b16 %v815, %v808
    %v963 = vpack.c.b16 %v816, %v809
    %v964 = vpack.c.b16 %v817, %v810
    %v965 = vpack.c.b16 %v818, %v811
    %v966 = vpack.c.b16 %v819, %v812
    %v967 = vpack.c.b16 %v820, %v813
    %v968 = vpack.c.b16 %v821, %v814
    %v969 = vpack.c.b16 %v829, %v822
    %v970 = vpack.c.b16 %v830, %v823
    %v971 = vpack.c.b16 %v831, %v824
    %v972 = vpack.c.b16 %v832, %v825
    %v973 = vpack.c.b16 %v833, %v826
    %v974 = vpack.c.b16 %v834, %v827
    %v975 = vpack.c.b16 %v835, %v828
    %v976 = vpack.c.b16 %v843, %v836
    %v977 = vpack.c.b16 %v844, %v837
    %v978 = vpack.c.b16 %v845, %v838
    %v979 = vpack.c.b16 %v846, %v839
    %v980 = vpack.c.b16 %v847, %v840
    %v981 = vpack.c.b16 %v848, %v841
    %v982 = vpack.c.b16 %v849, %v842
    %v983 = vpack.c.b16 %v857, %v850
    %v984 = vpack.c.b16 %v858, %v851
    %v985 = vpack.c.b16 %v859, %v852
    %v986 = vpack.c.b16 %v860, %v853
    %v987 = vpack.c.b16 %v861, %v854
    %v988 = vpack.c.b16 %v862, %v855
    %v989 = vpack.c.b16 %v863, %v856
    %v990 = vpack.c.b16 %v871, %v864
    %v991 = vpack.c.b16 %v872, %v865
    %v992 = vpack.c.b16 %v873, %v866
    %v993 = vpack.c.b16 %v874, %v867
    %v994 = vpack.c.b16 %v875, %v868
    %v995 = vpack.c.b16 %v876, %v869
    %v996 = vpack.c.b16 %v877, %v870
    %v997 = vpack.c.b16 %v885, %v878
    %v998 = vpack.c.b16 %v886, %v879
    %v999 = vpack.c.b16 %v887, %v880
    %v1000 = vpack.c.b16 %v888, %v881
    %v1001 = vpack.c.b16 %v889, %v882
    %v1002 = vpack.c.b16 %v890, %v883
    %v1003 = vpack.c.b16 %v891, %v884
    %1116 = vmatprep.subr.bf16.mxu0 %v893
    %1117 = vmatpush1.bf16.msra.mxu0 %v892
    %1118 = vmatprep.subr.bf16.mxu0 %v900
    %1119 = vmatpush1.bf16.msra.mxu0 %v899
    %1120 = vmatprep.subr.bf16.mxu0 %v907
    %1121 = vmatpush1.bf16.msra.mxu0 %v906
    %1122 = vmatprep.subr.bf16.mxu0 %v914
    %1123 = vmatpush1.bf16.msra.mxu0 %v913
    %1124 = vmatprep.subr.bf16.mxu0 %v921
    %1125 = vmatpush1.bf16.msra.mxu0 %v920
    %1126 = vmatprep.subr.bf16.mxu0 %v928
    %1127 = vmatpush1.bf16.msra.mxu0 %v927
    %1128 = vmatprep.subr.bf16.mxu0 %v935
    %1129 = vmatpush1.bf16.msra.mxu0 %v934
    %1130 = vmatprep.subr.bf16.mxu0 %v942
    %1131 = vmatpush1.bf16.msra.mxu0 %v941
    %1132 = vmatprep.subr.bf16.mxu0 %v949
    %1133 = vmatpush1.bf16.msra.mxu0 %v948
    %1134 = vmatprep.subr.bf16.mxu0 %v956
    %1135 = vmatpush1.bf16.msra.mxu0 %v955
    %1136 = vmatprep.subr.bf16.mxu0 %v963
    %1137 = vmatpush1.bf16.msra.mxu0 %v962
    %1138 = vmatprep.subr.bf16.mxu0 %v970
    %1139 = vmatpush1.bf16.msra.mxu0 %v969
    %1140 = vmatprep.subr.bf16.mxu0 %v977
    %1141 = vmatpush1.bf16.msra.mxu0 %v976
    %1142 = vmatprep.subr.bf16.mxu0 %v984
    %1143 = vmatpush1.bf16.msra.mxu0 %v983
    %1144 = vmatprep.subr.bf16.mxu0 %v991
    %1145 = vmatpush1.bf16.msra.mxu0 %v990
    %1146 = vmatprep.subr.bf16.mxu0 %v998
    %1147 = vmatpush1.bf16.msra.mxu0 %v997
    %1148 = vmatprep.mubr.bf16.mxu0 %v374
    %1149 = vmatmul.mubr.bf16.gmra.mrb[0].mxu0 %v373
    %v1150 = vpop.f32.mrb[0].mxu0
    %v1151 = vadd.f32 %v508, %v1150
    %v1152 = vpop.f32.mrb[0].mxu0
    %v1153 = vadd.f32 %v512, %v1152
    %v1154 = vpop.f32.mrb[0].mxu0
    %v1155 = vadd.f32 %v508, %v1154
    %v1156 = vpop.f32.mrb[0].mxu0
    %v1157 = vadd.f32 %v512, %v1156
    %1158 = vdwg.mxu0
    %1159 = vmatprep.subr.bf16.mxu0 %v895
    %1160 = vmatpush1.bf16.msra.mxu0 %v894
    %1161 = vmatprep.subr.bf16.mxu0 %v902
    %1162 = vmatpush1.bf16.msra.mxu0 %v901
    %1163 = vmatprep.subr.bf16.mxu0 %v909
    %1164 = vmatpush1.bf16.msra.mxu0 %v908
    %1165 = vmatprep.subr.bf16.mxu0 %v916
    %1166 = vmatpush1.bf16.msra.mxu0 %v915
    %1167 = vmatprep.subr.bf16.mxu0 %v923
    %1168 = vmatpush1.bf16.msra.mxu0 %v922
    %1169 = vmatprep.subr.bf16.mxu0 %v930
    %1170 = vmatpush1.bf16.msra.mxu0 %v929
    %1171 = vmatprep.subr.bf16.mxu0 %v937
    %1172 = vmatpush1.bf16.msra.mxu0 %v936
    %1173 = vmatprep.subr.bf16.mxu0 %v944
    %1174 = vmatpush1.bf16.msra.mxu0 %v943
    %1175 = vmatprep.subr.bf16.mxu0 %v951
    %1176 = vmatpush1.bf16.msra.mxu0 %v950
    %1177 = vmatprep.subr.bf16.mxu0 %v958
    %1178 = vmatpush1.bf16.msra.mxu0 %v957
    %1179 = vmatprep.subr.bf16.mxu0 %v965
    %1180 = vmatpush1.bf16.msra.mxu0 %v964
    %1181 = vmatprep.subr.bf16.mxu0 %v972
    %1182 = vmatpush1.bf16.msra.mxu0 %v971
    %1183 = vmatprep.subr.bf16.mxu0 %v979
    %1184 = vmatpush1.bf16.msra.mxu0 %v978
    %1185 = vmatprep.subr.bf16.mxu0 %v986
    %1186 = vmatpush1.bf16.msra.mxu0 %v985
    %1187 = vmatprep.subr.bf16.mxu0 %v993
    %1188 = vmatpush1.bf16.msra.mxu0 %v992
    %1189 = vmatprep.subr.bf16.mxu0 %v1000
    %1190 = vmatpush1.bf16.msra.mxu0 %v999
    %1191 = vmatprep.mubr.bf16.mxu0 %v374
    %1192 = vmatmul.mubr.bf16.gmra.mrb[0].mxu0 %v373
    %v1193 = vpop.f32.mrb[0].mxu0
    %v1194 = vadd.f32 %v516, %v1193
    %v1195 = vpop.f32.mrb[0].mxu0
    %v1196 = vadd.f32 %v520, %v1195
    %v1197 = vpop.f32.mrb[0].mxu0
    %v1198 = vadd.f32 %v516, %v1197
    %v1199 = vpop.f32.mrb[0].mxu0
    %v1200 = vadd.f32 %v520, %v1199
    %1201 = vdwg.mxu0
    %1202 = vmatprep.subr.bf16.mxu0 %v897
    %1203 = vmatpush1.bf16.msra.mxu0 %v896
    %1204 = vmatprep.subr.bf16.mxu0 %v904
    %1205 = vmatpush1.bf16.msra.mxu0 %v903
    %1206 = vmatprep.subr.bf16.mxu0 %v911
    %1207 = vmatpush1.bf16.msra.mxu0 %v910
    %1208 = vmatprep.subr.bf16.mxu0 %v918
    %1209 = vmatpush1.bf16.msra.mxu0 %v917
    %1210 = vmatprep.subr.bf16.mxu0 %v925
    %1211 = vmatpush1.bf16.msra.mxu0 %v924
    %1212 = vmatprep.subr.bf16.mxu0 %v932
    %1213 = vmatpush1.bf16.msra.mxu0 %v931
    %1214 = vmatprep.subr.bf16.mxu0 %v939
    %1215 = vmatpush1.bf16.msra.mxu0 %v938
    %1216 = vmatprep.subr.bf16.mxu0 %v946
    %1217 = vmatpush1.bf16.msra.mxu0 %v945
    %1218 = vmatprep.subr.bf16.mxu0 %v953
    %1219 = vmatpush1.bf16.msra.mxu0 %v952
    %1220 = vmatprep.subr.bf16.mxu0 %v960
    %1221 = vmatpush1.bf16.msra.mxu0 %v959
    %1222 = vmatprep.subr.bf16.mxu0 %v967
    %1223 = vmatpush1.bf16.msra.mxu0 %v966
    %1224 = vmatprep.subr.bf16.mxu0 %v974
    %1225 = vmatpush1.bf16.msra.mxu0 %v973
    %1226 = vmatprep.subr.bf16.mxu0 %v981
    %1227 = vmatpush1.bf16.msra.mxu0 %v980
    %1228 = vmatprep.subr.bf16.mxu0 %v988
    %1229 = vmatpush1.bf16.msra.mxu0 %v987
    %1230 = vmatprep.subr.bf16.mxu0 %v995
    %1231 = vmatpush1.bf16.msra.mxu0 %v994
    %1232 = vmatprep.subr.bf16.mxu0 %v1002
    %1233 = vmatpush1.bf16.msra.mxu0 %v1001
    %1234 = vmatprep.mubr.bf16.mxu0 %v374
    %1235 = vmatmul.mubr.bf16.gmra.mrb[0].mxu0 %v373
    %v1236 = vpop.f32.mrb[0].mxu0
    %v1237 = vadd.f32 %v524, %v1236
    %v1238 = vpop.f32.mrb[0].mxu0
    %v1239 = vadd.f32 %v528, %v1238
    %v1240 = vpop.f32.mrb[0].mxu0
    %v1241 = vadd.f32 %v524, %v1240
    %v1242 = vpop.f32.mrb[0].mxu0
    %v1243 = vadd.f32 %v528, %v1242
    %1244 = vdwg.mxu0
    %1245 = vmatprep.subr.bf16.mxu0 0
    %1246 = vmatpush1.bf16.msra.mxu0 %v898
    %1247 = vmatprep.subr.bf16.mxu0 0
    %1248 = vmatpush1.bf16.msra.mxu0 %v905
    %1249 = vmatprep.subr.bf16.mxu0 0
    %1250 = vmatpush1.bf16.msra.mxu0 %v912
    %1251 = vmatprep.subr.bf16.mxu0 0
    %1252 = vmatpush1.bf16.msra.mxu0 %v919
    %1253 = vmatprep.subr.bf16.mxu0 0
    %1254 = vmatpush1.bf16.msra.mxu0 %v926
    %1255 = vmatprep.subr.bf16.mxu0 0
    %1256 = vmatpush1.bf16.msra.mxu0 %v933
    %1257 = vmatprep.subr.bf16.mxu0 0
    %1258 = vmatpush1.bf16.msra.mxu0 %v940
    %1259 = vmatprep.subr.bf16.mxu0 0
    %1260 = vmatpush1.bf16.msra.mxu0 %v947
    %1261 = vmatprep.subr.bf16.mxu0 0
    %1262 = vmatpush1.bf16.msra.mxu0 %v954
    %1263 = vmatprep.subr.bf16.mxu0 0
    %1264 = vmatpush1.bf16.msra.mxu0 %v961
    %1265 = vmatprep.subr.bf16.mxu0 0
    %1266 = vmatpush1.bf16.msra.mxu0 %v968
    %1267 = vmatprep.subr.bf16.mxu0 0
    %1268 = vmatpush1.bf16.msra.mxu0 %v975
    %1269 = vmatprep.subr.bf16.mxu0 0
    %1270 = vmatpush1.bf16.msra.mxu0 %v982
    %1271 = vmatprep.subr.bf16.mxu0 0
    %1272 = vmatpush1.bf16.msra.mxu0 %v989
    %1273 = vmatprep.subr.bf16.mxu0 0
    %1274 = vmatpush1.bf16.msra.mxu0 %v996
    %1275 = vmatprep.subr.bf16.mxu0 0
    %1276 = vmatpush1.bf16.msra.mxu0 %v1003
    %1277 = vmatprep.mubr.bf16.mxu0 %v374
    %1278 = vmatmul.mubr.bf16.gmra.mrb[0].mxu0 %v373
    %v1279 = vpop.f32.mrb[0].mxu0
    %v1280 = vadd.f32 %v532, %v1279
    %v1281 = vpop.f32.mrb[0].mxu0
    %v1282 = vpop.f32.mrb[0].mxu0
    %v1283 = vadd.f32 %v532, %v1282
    %v1284 = vpop.f32.mrb[0].mxu0
    %1285 = vdwg.mxu0
    %vm1286 = vcmp.gt.f32.partialorder %v1151, 0.0
    %vm1287 = vcmp.gt.f32.partialorder %v1153, 0.0
    %vm1288 = vcmp.gt.f32.partialorder %v1194, 0.0
    %vm1289 = vcmp.gt.f32.partialorder %v1196, 0.0
    %vm1290 = vcmp.gt.f32.partialorder %v1237, 0.0
    %vm1291 = vcmp.gt.f32.partialorder %v1239, 0.0
    %vm1292 = vcmp.gt.f32.partialorder %v1280, 0.0
    %vm1293 = vcmp.gt.f32.partialorder %v1155, 0.0
    %vm1294 = vcmp.gt.f32.partialorder %v1157, 0.0
    %vm1295 = vcmp.gt.f32.partialorder %v1198, 0.0
    %vm1296 = vcmp.gt.f32.partialorder %v1200, 0.0
    %vm1297 = vcmp.gt.f32.partialorder %v1241, 0.0
    %vm1298 = vcmp.gt.f32.partialorder %v1243, 0.0
    %vm1299 = vcmp.gt.f32.partialorder %v1283, 0.0
    %v1300 = vmul.f32 %v1151, 0.01
    %v1301 = vmul.f32 %v1153, 0.01
    %v1302 = vmul.f32 %v1194, 0.01
    %v1303 = vmul.f32 %v1196, 0.01
    %v1304 = vmul.f32 %v1237, 0.01
    %v1305 = vmul.f32 %v1239, 0.01
    %v1306 = vmul.f32 %v1280, 0.01
    %v1307 = vmul.f32 %v1155, 0.01
    %v1308 = vmul.f32 %v1157, 0.01
    %v1309 = vmul.f32 %v1198, 0.01
    %v1310 = vmul.f32 %v1200, 0.01
    %v1311 = vmul.f32 %v1241, 0.01
    %v1312 = vmul.f32 %v1243, 0.01
    %v1313 = vmul.f32 %v1283, 0.01
    %v1314 = vsel %vm1286, %v1151, %v1300
    %v1315 = vsel %vm1287, %v1153, %v1301
    %v1316 = vsel %vm1288, %v1194, %v1302
    %v1317 = vsel %vm1289, %v1196, %v1303
    %v1318 = vsel %vm1290, %v1237, %v1304
    %v1319 = vsel %vm1291, %v1239, %v1305
    %v1320 = vsel %vm1292, %v1280, %v1306
    %v1321 = vsel %vm1293, %v1155, %v1307
    %v1322 = vsel %vm1294, %v1157, %v1308
    %v1323 = vsel %vm1295, %v1198, %v1309
    %v1324 = vsel %vm1296, %v1200, %v1310
    %v1325 = vsel %vm1297, %v1241, %v1311
    %v1326 = vsel %vm1298, %v1243, %v1312
    %v1327 = vsel %vm1299, %v1283, %v1313
    %v1328 = vpack.c.bf16 %v1321, %v1314
    %v1329 = vpack.c.bf16 %v1322, %v1315
    %v1330 = vpack.c.bf16 %v1323, %v1316
    %v1331 = vpack.c.bf16 %v1324, %v1317
    %v1332 = vpack.c.bf16 %v1325, %v1318
    %v1333 = vpack.c.bf16 %v1326, %v1319
    %v1334 = vpack.c.bf16 %v1327, %v1320
    %v1342 = vunpack.c.l.b16 %v1328
    %v1343 = vunpack.c.l.b16 %v1329
    %v1344 = vunpack.c.l.b16 %v1330
    %v1345 = vunpack.c.l.b16 %v1331
    %v1346 = vunpack.c.l.b16 %v1332
    %v1347 = vunpack.c.l.b16 %v1333
    %v1348 = vunpack.c.l.b16 %v1334
    %v1349 = vunpack.c.h.b16 %v1328
    %v1350 = vunpack.c.h.b16 %v1329
    %v1351 = vunpack.c.h.b16 %v1330
    %v1352 = vunpack.c.h.b16 %v1331
    %v1353 = vunpack.c.h.b16 %v1332
    %v1354 = vunpack.c.h.b16 %v1333
    %v1355 = vunpack.c.h.b16 %v1334
    %v1356 = vpack.c.b16 %v1343, %v1342
    %v1357 = vpack.c.b16 %v1345, %v1344
    %v1358 = vpack.c.b16 %v1347, %v1346
    %v1359 = vpack.c.b16 %v1348, %v1348
    %v1360 = vpack.c.b16 %v1350, %v1349
    %v1361 = vpack.c.b16 %v1352, %v1351
    %v1362 = vpack.c.b16 %v1354, %v1353
    %v1363 = vpack.c.b16 %v1355, %v1355
    %1372 = vst [vmem:[#allocation10] sm:$0xff] %v1356
    %1373 = vst [vmem:[#allocation10 + $0x8] sm:$0xff] %v1357
    %1374 = vst [vmem:[#allocation10 + $0x10] sm:$0xff] %v1358
    %1375 = vst [vmem:[#allocation10 + $0x18] sm:$0xf] %v1359
    %1376 = vst [vmem:[#allocation10 + $0x1c] sm:$0xff] %v1360
    %1377 = vst [vmem:[#allocation10 + $0x24] sm:$0xff] %v1361
    %1378 = vst [vmem:[#allocation10 + $0x2c] sm:$0xff] %v1362
    %1379 = vst [vmem:[#allocation10 + $0x34] sm:$0xf] %v1363
    // Predicated region
    $region46: #{tpu_custom_call.1} parent=1 // pred_check
      _
    $region47: #{tpu_custom_call.1} parent=1 // pred_check_branch
      %1381 = sbr.rel (0) target = $region49
    $region48: #{tpu_custom_call.1} parent=1 // pred_region
      %s1383 = ssub.s32 896, 896
      %1384 = vsyncadd [#allocation4], %s1383
      %s1385 = sshll.u32 [#allocation10], 4
      %s1386 = int_to_ptr.vmem [resolvable:$true] %s1385
      %1391 = dma.vmem_to_hbm [thread:$0]  %s1386, 896, %s7, [#allocation4], 448, 448, 28
    $region49: #{tpu_custom_call.1} parent=1 // pred_fallthru
      _
    // Predicated region
    $region50: #{tpu_custom_call.1} parent=1 // pred_check
      _
    $region51: #{tpu_custom_call.1} parent=1 // pred_check_branch
      %1393 = sbr.rel (0) target = $region53
    $region52: #{tpu_custom_call.1} parent=1 // pred_region
      %1394 = dma.done [#allocation4], 896
    $region53: #{tpu_custom_call.1} parent=1 // pred_fallthru
      _
    %1395 = vsyncpa [#allocation3], 1
    %1396 = vsyncpa [#allocation6], 1
    %1397 = vsyncpa [#allocation9], 1
    %1398 = vsyncpa [#allocation4], 1

</llo_original>
